<compile_context>
chip_gen: v7x
topology: tpu7x:2x2x1
jax: 0.10.0
libtpu: 0.0.40
codegen_flags: <defaults>
</compile_context>

<pallas_src>
import jax
import jax.numpy as jnp
from jax.experimental import pallas as pl
from jax.experimental.pallas import tpu as pltpu  # noqa: F401  (TPU backend)

LANE = 128


# ----------------------------- Pallas kernel ------------------------------- #
def _fused_sage_kernel(a_ref, x_ref,
                       w1l_ref, w1r_ref, b1_ref,
                       w2l_ref, w2r_ref, b2_ref,
                       w3l_ref, w3r_ref, b3_ref,
                       o_ref):
    """All 3 SAGEConv layers + activations, fully resident in VMEM.

    MXU operands are bf16 with f32 accumulation; bias adds and activations
    stay f32 (v5e-safe elementwise path).
    """
    a = a_ref[...]                                    # [N, N]  bf16 mean-agg adjacency
    x = x_ref[...]                                    # [N, F0] bf16 node features

    # ---- layer 1: SAGEConv(F0 -> H1), tanh ---------------------------------
    # f_in (8) << f_out (256): aggregate first, (A @ x) @ W_l keeps the O(N^2)
    # adjacency matmul at inner width F0.
    agg = jnp.dot(a, x, preferred_element_type=jnp.float32).astype(jnp.bfloat16)
    h = jnp.dot(x, w1r_ref[...], preferred_element_type=jnp.float32)          # root
    h += jnp.dot(agg, w1l_ref[...], preferred_element_type=jnp.float32)       # neighbor
    h = jnp.tanh(h + b1_ref[...])                                             # f32 EUP
    hb = h.astype(jnp.bfloat16)

    # ---- layer 2: SAGEConv(H1 -> H2), relu ---------------------------------
    # f_out (192) < f_in (256): reassociate to A @ (h @ W_l) so the O(N^2)
    # matmul runs at width 192 instead of 256 (~25% fewer MXU FLOPs at scale).
    hl = jnp.dot(hb, w2l_ref[...],
                 preferred_element_type=jnp.float32).astype(jnp.bfloat16)
    h2 = jnp.dot(hb, w2r_ref[...], preferred_element_type=jnp.float32)        # root
    h2 += jnp.dot(a, hl, preferred_element_type=jnp.float32)                  # neighbor
    h2 = jnp.maximum(h2 + b2_ref[...], 0.0)                                   # f32 relu
    h2b = h2.astype(jnp.bfloat16)

    # ---- layer 3: SAGEConv(H2 -> C_pad), sigmoid ---------------------------
    # Also reassociated (padded f_out=128 < f_in=192).  Weights/bias are
    # pre-padded to a lane-dense 128-wide output in the wrapper.
    hl = jnp.dot(h2b, w3l_ref[...],
                 preferred_element_type=jnp.float32).astype(jnp.bfloat16)
    out = jnp.dot(h2b, w3r_ref[...], preferred_element_type=jnp.float32)      # root
    out += jnp.dot(a, hl, preferred_element_type=jnp.float32)                 # neighbor
    out = out + b3_ref[...]
    # exact sigmoid as a single EUP tanh push (no exp + approx reciprocal)
    out = 0.5 * (jnp.tanh(0.5 * out) + 1.0)

    o_ref[...] = out.astype(o_ref.dtype)     # single unmasked 128-lane store


# ------------------------------- wrappers ---------------------------------- #
def build_adjacency(edge_index, num_nodes):
    """Dense row-normalized adjacency reproducing PyG scatter-mean semantics.

    edge_index: [2, E] int32, edge_index[0]=source j, edge_index[1]=target i.
    Nodes with no incoming edges aggregate to zero (like PyG scatter-mean).
    Normalization is done in f32; the result is cast to bf16 at the call site.
    """
    src = edge_index[0]
    dst = edge_index[1]
    adj = jnp.zeros((num_nodes, num_nodes), jnp.float32)
    adj = adj.at[dst, src].add(1.0)
    deg = jnp.sum(adj, axis=1, keepdims=True)
    return adj / jnp.maximum(deg, 1.0)


def init_sage_params(key, f_in, f_out):
    """Deterministic glorot-ish init for one SAGEConv layer."""
    k1, k2 = jax.random.split(key)
    scale = jnp.sqrt(2.0 / (f_in + f_out)).astype(jnp.float32)
    w_l = jax.random.normal(k1, (f_in, f_out), jnp.float32) * scale  # lin_l (has bias)
    w_r = jax.random.normal(k2, (f_in, f_out), jnp.float32) * scale  # lin_r (no bias)
    b = jnp.zeros((1, f_out), jnp.float32)
    return w_l, w_r, b


def sage_conv_forward(x, edge_index, params):
    """Full SageConv module forward: one fused pallas_call.

    Accepts a PyG-style stacked batch too (multiple graphs concatenated along
    the node axis with offset edge indices): batching graphs this way is the
    recommended path to fill the MXU M dimension.
    """
    n = x.shape[0]
    adj = build_adjacency(edge_index, n)

    (w1l, w1r, b1), (w2l, w2r, b2), (w3l, w3r, b3) = params

    # Pad the final layer to a lane-dense (multiple-of-128) output width.
    num_class = w3l.shape[1]
    c_pad = ((num_class + LANE - 1) // LANE) * LANE
    pad = c_pad - num_class
    w3l_p = jnp.pad(w3l, ((0, 0), (0, pad)))
    w3r_p = jnp.pad(w3r, ((0, 0), (0, pad)))
    b3_p = jnp.pad(b3, ((0, 0), (0, pad)))

    bf = jnp.bfloat16
    out_padded = pl.pallas_call(
        _fused_sage_kernel,
        out_shape=jax.ShapeDtypeStruct((n, c_pad), jnp.float32),
        # Single whole-array invocation: no grid / BlockSpecs needed at this
        # size — every operand is a whole-array VMEM block and all
        # intermediates stay in VMEM/vregs.
        # TODO(synk): for large graphs, switch to a row-tiled grid over A/x/out
        # (BlockSpec((tm, N)) + dimension_semantics=("parallel",...) so v7x's
        # second TensorCore is used, per-generation tile sizes +
        # vmem_limit_bytes), and replace the dense N^2 adjacency with a
        # CSR/gather aggregation.
    )(adj.astype(bf), x.astype(bf),
      w1l.astype(bf), w1r.astype(bf), b1,
      w2l.astype(bf), w2r.astype(bf), b2,
      w3l_p.astype(bf), w3r_p.astype(bf), b3_p)

    return out_padded[:, :num_class]


if __name__ == "__main__":
    NUM_NODES = 16
    NUM_FEAT = 8
    NUM_CLASS = 4
    HIDDEN = 256
    HIDDEN2 = HIDDEN - 64  # 192

    key = jax.random.PRNGKey(0)
    kx, ke, k1, k2, k3 = jax.random.split(key, 5)

    # node features (data.x): [N, num_feat]
    x = jax.random.normal(kx, (NUM_NODES, NUM_FEAT), jnp.float32)

    # edge_index (data.edge_index): [2, E] int32
    num_edges = 48
    edge_index = jax.random.randint(ke, (2, num_edges), 0, NUM_NODES, jnp.int32)

    # deterministic params matching SAGEConv(num_feat,256),(256,192),(192,num_class)
    params = (
        init_sage_params(k1, NUM_FEAT, HIDDEN),
        init_sage_params(k2, HIDDEN, HIDDEN2),
        init_sage_params(k3, HIDDEN2, NUM_CLASS),
    )

    out = sage_conv_forward(x, edge_index, params)
    out = jax.block_until_ready(out)
    assert out.shape == (NUM_NODES, NUM_CLASS)
    assert bool(jnp.all(jnp.isfinite(out)))
    assert bool(jnp.all((out >= 0.0) & (out <= 1.0)))   # sigmoid range
    print("KERNEL_OK")
</pallas_src>

<mosaic_0001>
module attributes {stable_mosaic.version = 11 : i64} {
  func.func @_fused_sage_kernel(%arg0: memref<16x16xbf16, #tpu.memory_space<vmem>>, %arg1: memref<16x8xbf16, #tpu.memory_space<vmem>>, %arg2: memref<8x256xbf16, #tpu.memory_space<vmem>>, %arg3: memref<8x256xbf16, #tpu.memory_space<vmem>>, %arg4: memref<1x256xf32, #tpu.memory_space<vmem>>, %arg5: memref<256x192xbf16, #tpu.memory_space<vmem>>, %arg6: memref<256x192xbf16, #tpu.memory_space<vmem>>, %arg7: memref<1x192xf32, #tpu.memory_space<vmem>>, %arg8: memref<192x128xbf16, #tpu.memory_space<vmem>>, %arg9: memref<192x128xbf16, #tpu.memory_space<vmem>>, %arg10: memref<1x128xf32, #tpu.memory_space<vmem>>, %arg11: memref<16x128xf32, #tpu.memory_space<vmem>>) attributes {dimension_semantics = [], scalar_prefetch = 0 : i64, scratch_operands = 0 : i64, tpu.core_type = #tpu.core_type<tc>} {
    %c0 = arith.constant 0 : index
    %c0_0 = arith.constant 0 : index
    %0 = vector.load %arg0[%c0, %c0_0] : memref<16x16xbf16, #tpu.memory_space<vmem>>, vector<16x16xbf16>
    %c0_1 = arith.constant 0 : index
    %c0_2 = arith.constant 0 : index
    %1 = vector.load %arg1[%c0_1, %c0_2] : memref<16x8xbf16, #tpu.memory_space<vmem>>, vector<16x8xbf16>
    %cst = arith.constant dense<0.000000e+00> : vector<16x8xf32>
    %2 = tpu.matmul %0, %1, %cst {dimension_numbers = #tpu.dot_dimension_numbers<[1], [0], [0], [1], [0, 0, 1, 1], [], []>} : vector<16x16xbf16>, vector<16x8xbf16>, vector<16x8xf32> -> vector<16x8xf32>
    %3 = arith.truncf %2 : vector<16x8xf32> to vector<16x8xbf16>
    %c0_3 = arith.constant 0 : index
    %c0_4 = arith.constant 0 : index
    %4 = vector.load %arg3[%c0_3, %c0_4] : memref<8x256xbf16, #tpu.memory_space<vmem>>, vector<8x256xbf16>
    %cst_5 = arith.constant dense<0.000000e+00> : vector<16x256xf32>
    %5 = tpu.matmul %1, %4, %cst_5 {dimension_numbers = #tpu.dot_dimension_numbers<[1], [0], [0], [1], [0, 0, 1, 1], [], []>} : vector<16x8xbf16>, vector<8x256xbf16>, vector<16x256xf32> -> vector<16x256xf32>
    %c0_6 = arith.constant 0 : index
    %c0_7 = arith.constant 0 : index
    %6 = vector.load %arg2[%c0_6, %c0_7] : memref<8x256xbf16, #tpu.memory_space<vmem>>, vector<8x256xbf16>
    %cst_8 = arith.constant dense<0.000000e+00> : vector<16x256xf32>
    %7 = tpu.matmul %3, %6, %cst_8 {dimension_numbers = #tpu.dot_dimension_numbers<[1], [0], [0], [1], [0, 0, 1, 1], [], []>} : vector<16x8xbf16>, vector<8x256xbf16>, vector<16x256xf32> -> vector<16x256xf32>
    %8 = arith.addf %5, %7 : vector<16x256xf32>
    %c0_9 = arith.constant 0 : index
    %c0_10 = arith.constant 0 : index
    %9 = vector.load %arg4[%c0_9, %c0_10] : memref<1x256xf32, #tpu.memory_space<vmem>>, vector<1x256xf32>
    %10 = vector.broadcast %9 : vector<1x256xf32> to vector<16x256xf32>
    %11 = arith.addf %8, %10 : vector<16x256xf32>
    %12 = math.tanh %11 : vector<16x256xf32>
    %13 = arith.truncf %12 : vector<16x256xf32> to vector<16x256xbf16>
    %c0_11 = arith.constant 0 : index
    %c0_12 = arith.constant 0 : index
    %14 = vector.load %arg5[%c0_11, %c0_12] : memref<256x192xbf16, #tpu.memory_space<vmem>>, vector<256x192xbf16>
    %cst_13 = arith.constant dense<0.000000e+00> : vector<16x192xf32>
    %15 = tpu.matmul %13, %14, %cst_13 {dimension_numbers = #tpu.dot_dimension_numbers<[1], [0], [0], [1], [0, 0, 1, 1], [], []>} : vector<16x256xbf16>, vector<256x192xbf16>, vector<16x192xf32> -> vector<16x192xf32>
    %16 = arith.truncf %15 : vector<16x192xf32> to vector<16x192xbf16>
    %c0_14 = arith.constant 0 : index
    %c0_15 = arith.constant 0 : index
    %17 = vector.load %arg6[%c0_14, %c0_15] : memref<256x192xbf16, #tpu.memory_space<vmem>>, vector<256x192xbf16>
    %cst_16 = arith.constant dense<0.000000e+00> : vector<16x192xf32>
    %18 = tpu.matmul %13, %17, %cst_16 {dimension_numbers = #tpu.dot_dimension_numbers<[1], [0], [0], [1], [0, 0, 1, 1], [], []>} : vector<16x256xbf16>, vector<256x192xbf16>, vector<16x192xf32> -> vector<16x192xf32>
    %cst_17 = arith.constant dense<0.000000e+00> : vector<16x192xf32>
    %19 = tpu.matmul %0, %16, %cst_17 {dimension_numbers = #tpu.dot_dimension_numbers<[1], [0], [0], [1], [0, 0, 1, 1], [], []>} : vector<16x16xbf16>, vector<16x192xbf16>, vector<16x192xf32> -> vector<16x192xf32>
    %20 = arith.addf %18, %19 : vector<16x192xf32>
    %c0_18 = arith.constant 0 : index
    %c0_19 = arith.constant 0 : index
    %21 = vector.load %arg7[%c0_18, %c0_19] : memref<1x192xf32, #tpu.memory_space<vmem>>, vector<1x192xf32>
    %22 = vector.broadcast %21 : vector<1x192xf32> to vector<16x192xf32>
    %23 = arith.addf %20, %22 : vector<16x192xf32>
    %cst_20 = arith.constant 0.000000e+00 : f32
    %24 = vector.broadcast %cst_20 : f32 to vector<16x192xf32>
    %25 = arith.maximumf %23, %24 : vector<16x192xf32>
    %26 = arith.truncf %25 : vector<16x192xf32> to vector<16x192xbf16>
    %c0_21 = arith.constant 0 : index
    %c0_22 = arith.constant 0 : index
    %27 = vector.load %arg8[%c0_21, %c0_22] : memref<192x128xbf16, #tpu.memory_space<vmem>>, vector<192x128xbf16>
    %cst_23 = arith.constant dense<0.000000e+00> : vector<16x128xf32>
    %28 = tpu.matmul %26, %27, %cst_23 {dimension_numbers = #tpu.dot_dimension_numbers<[1], [0], [0], [1], [0, 0, 1, 1], [], []>} : vector<16x192xbf16>, vector<192x128xbf16>, vector<16x128xf32> -> vector<16x128xf32>
    %29 = arith.truncf %28 : vector<16x128xf32> to vector<16x128xbf16>
    %c0_24 = arith.constant 0 : index
    %c0_25 = arith.constant 0 : index
    %30 = vector.load %arg9[%c0_24, %c0_25] : memref<192x128xbf16, #tpu.memory_space<vmem>>, vector<192x128xbf16>
    %cst_26 = arith.constant dense<0.000000e+00> : vector<16x128xf32>
    %31 = tpu.matmul %26, %30, %cst_26 {dimension_numbers = #tpu.dot_dimension_numbers<[1], [0], [0], [1], [0, 0, 1, 1], [], []>} : vector<16x192xbf16>, vector<192x128xbf16>, vector<16x128xf32> -> vector<16x128xf32>
    %cst_27 = arith.constant dense<0.000000e+00> : vector<16x128xf32>
    %32 = tpu.matmul %0, %29, %cst_27 {dimension_numbers = #tpu.dot_dimension_numbers<[1], [0], [0], [1], [0, 0, 1, 1], [], []>} : vector<16x16xbf16>, vector<16x128xbf16>, vector<16x128xf32> -> vector<16x128xf32>
    %33 = arith.addf %31, %32 : vector<16x128xf32>
    %c0_28 = arith.constant 0 : index
    %c0_29 = arith.constant 0 : index
    %34 = vector.load %arg10[%c0_28, %c0_29] : memref<1x128xf32, #tpu.memory_space<vmem>>, vector<1x128xf32>
    %35 = vector.broadcast %34 : vector<1x128xf32> to vector<16x128xf32>
    %36 = arith.addf %33, %35 : vector<16x128xf32>
    %cst_30 = arith.constant 5.000000e-01 : f32
    %37 = vector.broadcast %cst_30 : f32 to vector<16x128xf32>
    %38 = arith.mulf %37, %36 : vector<16x128xf32>
    %39 = math.tanh %38 : vector<16x128xf32>
    %cst_31 = arith.constant 1.000000e+00 : f32
    %40 = vector.broadcast %cst_31 : f32 to vector<16x128xf32>
    %41 = arith.addf %39, %40 : vector<16x128xf32>
    %cst_32 = arith.constant 5.000000e-01 : f32
    %42 = vector.broadcast %cst_32 : f32 to vector<16x128xf32>
    %43 = arith.mulf %42, %41 : vector<16x128xf32>
    %c0_33 = arith.constant 0 : index
    %c0_34 = arith.constant 0 : index
    %44 = vector.load %arg11[%c0_33, %c0_34] : memref<16x128xf32, #tpu.memory_space<vmem>>, vector<16x128xf32>
    tpu.vector_store %arg11[%c0_33, %c0_34], %43 {strides = array<i32>} : memref<16x128xf32, #tpu.memory_space<vmem>>, vector<16x128xf32>,
    return
  }
}

</mosaic_0001>

<llo_original>
// kernel: tpu_custom_call.1
$region0: #{tpu_custom_call.1}
  #allocation0 [shape = 'u32[]', space=smem, size = 0x4, offset = 0x4, fixed_abs, tag = 'smem constant byte address 0x4 - core index']
  #allocation1 [shape = 'u32[144,128]{1,0:T(1,128)}', space=vmem, size = 0x12000, scoped, tag = 'internal scratch']
  %s0 = inlined_call_operand.vmem [shape: bf16[16,16], index: 0, kind: input, shape index: {}]
  %s1 = inlined_call_operand.vmem [shape: bf16[16,8], index: 1, kind: input, shape index: {}]
  %s2 = inlined_call_operand.vmem [shape: bf16[8,256], index: 2, kind: input, shape index: {}]
  %s3 = inlined_call_operand.vmem [shape: bf16[8,256], index: 3, kind: input, shape index: {}]
  %s4 = inlined_call_operand.vmem [shape: f32[1,256], index: 4, kind: input, shape index: {}]
  %s5 = inlined_call_operand.vmem [shape: bf16[256,192], index: 5, kind: input, shape index: {}]
  %s6 = inlined_call_operand.vmem [shape: bf16[256,192], index: 6, kind: input, shape index: {}]
  %s7 = inlined_call_operand.vmem [shape: f32[1,192], index: 7, kind: input, shape index: {}]
  %s8 = inlined_call_operand.vmem [shape: bf16[192,128], index: 8, kind: input, shape index: {}]
  %s9 = inlined_call_operand.vmem [shape: bf16[192,128], index: 9, kind: input, shape index: {}]
  %s10 = inlined_call_operand.vmem [shape: f32[1,128], index: 10, kind: input, shape index: {}]
  %s11 = inlined_call_operand.hbm [shape: f32[16,128], index: 11, kind: output, shape index: {}]
  %s12 = sld [smem:[#allocation0]]
  $region54: #{tpu_custom_call.1} parent=0
    _
  %s14 = ssub.s32 1, %s12
  %s15 = scalar_select 0, %s14, %s12
  $region1: #{tpu_custom_call.1} parent=0
    #allocation2 [shape = 'u8[8192]{0}', space=vmem, size = 0x2000, scoped, tag = 'output window, operand 0, single buffered']
    #allocation3 [shape = 's32[1]{0}', space=sflag, size = 0x4, scoped, tag = 'scoped memory for tpu_custom_call.1']
    %16 = vsyncpa [#allocation3], 0
    // Predicated region
    $region2: #{tpu_custom_call.1} parent=1 // pred_check
      _
    $region3: #{tpu_custom_call.1} parent=1 // pred_check_branch
      %18 = sbr.rel (0) target = $region5
    $region4: #{tpu_custom_call.1} parent=1 // pred_region
      _
    $region5: #{tpu_custom_call.1} parent=1 // pred_fallthru
      _
    // Predicated region
    $region6: #{tpu_custom_call.1} parent=1 // pred_check
      _
    $region7: #{tpu_custom_call.1} parent=1 // pred_check_branch
      %20 = sbr.rel (0) target = $region9
    $region8: #{tpu_custom_call.1} parent=1 // pred_region
      _
    $region9: #{tpu_custom_call.1} parent=1 // pred_fallthru
      _
    // Predicated region
    $region10: #{tpu_custom_call.1} parent=1 // pred_check
      _
    $region11: #{tpu_custom_call.1} parent=1 // pred_check_branch
      %22 = sbr.rel (0) target = $region13
    $region12: #{tpu_custom_call.1} parent=1 // pred_region
      _
    $region13: #{tpu_custom_call.1} parent=1 // pred_fallthru
      _
    // Predicated region
    $region14: #{tpu_custom_call.1} parent=1 // pred_check
      _
    $region15: #{tpu_custom_call.1} parent=1 // pred_check_branch
      %24 = sbr.rel (0) target = $region17
    $region16: #{tpu_custom_call.1} parent=1 // pred_region
      _
    $region17: #{tpu_custom_call.1} parent=1 // pred_fallthru
      _
    // Predicated region
    $region18: #{tpu_custom_call.1} parent=1 // pred_check
      _
    $region19: #{tpu_custom_call.1} parent=1 // pred_check_branch
      %26 = sbr.rel (0) target = $region21
    $region20: #{tpu_custom_call.1} parent=1 // pred_region
      _
    $region21: #{tpu_custom_call.1} parent=1 // pred_fallthru
      _
    // Predicated region
    $region22: #{tpu_custom_call.1} parent=1 // pred_check
      _
    $region23: #{tpu_custom_call.1} parent=1 // pred_check_branch
      %28 = sbr.rel (0) target = $region25
    $region24: #{tpu_custom_call.1} parent=1 // pred_region
      _
    $region25: #{tpu_custom_call.1} parent=1 // pred_fallthru
      _
    // Predicated region
    $region26: #{tpu_custom_call.1} parent=1 // pred_check
      _
    $region27: #{tpu_custom_call.1} parent=1 // pred_check_branch
      %30 = sbr.rel (0) target = $region29
    $region28: #{tpu_custom_call.1} parent=1 // pred_region
      _
    $region29: #{tpu_custom_call.1} parent=1 // pred_fallthru
      _
    // Predicated region
    $region30: #{tpu_custom_call.1} parent=1 // pred_check
      _
    $region31: #{tpu_custom_call.1} parent=1 // pred_check_branch
      %32 = sbr.rel (0) target = $region33
    $region32: #{tpu_custom_call.1} parent=1 // pred_region
      _
    $region33: #{tpu_custom_call.1} parent=1 // pred_fallthru
      _
    // Predicated region
    $region34: #{tpu_custom_call.1} parent=1 // pred_check
      _
    $region35: #{tpu_custom_call.1} parent=1 // pred_check_branch
      %34 = sbr.rel (0) target = $region37
    $region36: #{tpu_custom_call.1} parent=1 // pred_region
      _
    $region37: #{tpu_custom_call.1} parent=1 // pred_fallthru
      _
    // Predicated region
    $region38: #{tpu_custom_call.1} parent=1 // pred_check
      _
    $region39: #{tpu_custom_call.1} parent=1 // pred_check_branch
      %36 = sbr.rel (0) target = $region41
    $region40: #{tpu_custom_call.1} parent=1 // pred_region
      _
    $region41: #{tpu_custom_call.1} parent=1 // pred_fallthru
      _
    // Predicated region
    $region42: #{tpu_custom_call.1} parent=1 // pred_check
      _
    $region43: #{tpu_custom_call.1} parent=1 // pred_check_branch
      %38 = sbr.rel (0) target = $region45
    $region44: #{tpu_custom_call.1} parent=1 // pred_region
      _
    $region45: #{tpu_custom_call.1} parent=1 // pred_fallthru
      _
    %v40 = vld [vmem:[%s0] sm:$0xf]
    %v41 = vld [vmem:[%s0 + $0x4] sm:$0xf]
    %v42 = vld [vmem:[%s1] sm:$0xf]
    %v43 = vld [vmem:[%s1 + $0x4] sm:$0xf]
    %v46 = vunpack.c.l.b16 %v40
    %v47 = vunpack.c.l.b16 %v41
    %v48 = vpack.c.b16 %v47, %v46
    %v51 = vunpack.c.l.b16 %v42
    %v52 = vunpack.c.l.b16 %v43
    %v53 = vpack.c.b16 %v52, %v51
    %vm55 = vcmask 130048
    %v57 = vsel %vm55, %v48, 0
    %59 = vmatprep.subr.bf16.mxu0 0
    %60 = vmatpush1.bf16.msra.mxu0 %v53
    %61 = vmatprep.subr.bf16.mxu0 0
    %62 = vmatpush1.bf16.msra.mxu0 0
    %63 = vmatprep.subr.bf16.mxu0 0
    %64 = vmatpush1.bf16.msra.mxu0 0
    %65 = vmatprep.subr.bf16.mxu0 0
    %66 = vmatpush1.bf16.msra.mxu0 0
    %67 = vmatprep.subr.bf16.mxu0 0
    %68 = vmatpush1.bf16.msra.mxu0 0
    %69 = vmatprep.subr.bf16.mxu0 0
    %70 = vmatpush1.bf16.msra.mxu0 0
    %71 = vmatprep.subr.bf16.mxu0 0
    %72 = vmatpush1.bf16.msra.mxu0 0
    %73 = vmatprep.subr.bf16.mxu0 0
    %74 = vmatpush1.bf16.msra.mxu0 0
    %75 = vmatprep.subr.bf16.mxu0 0
    %76 = vmatpush1.bf16.msra.mxu0 0
    %77 = vmatprep.subr.bf16.mxu0 0
    %78 = vmatpush1.bf16.msra.mxu0 0
    %79 = vmatprep.subr.bf16.mxu0 0
    %80 = vmatpush1.bf16.msra.mxu0 0
    %81 = vmatprep.subr.bf16.mxu0 0
    %82 = vmatpush1.bf16.msra.mxu0 0
    %83 = vmatprep.subr.bf16.mxu0 0
    %84 = vmatpush1.bf16.msra.mxu0 0
    %85 = vmatprep.subr.bf16.mxu0 0
    %86 = vmatpush1.bf16.msra.mxu0 0
    %87 = vmatprep.subr.bf16.mxu0 0
    %88 = vmatpush1.bf16.msra.mxu0 0
    %89 = vmatprep.subr.bf16.mxu0 0
    %90 = vmatpush1.bf16.msra.mxu0 0
    %91 = vmatprep.mubr.bf16.mxu0 0
    %92 = vmatmul.mubr.bf16.gmra.mrb[0].mxu0 %v57
    %v93 = vpop.f32.mrb[0].mxu0
    %v94 = vadd.f32 0.0, %v93
    %v95 = vpop.f32.mrb[0].mxu0
    %v96 = vpop.f32.mrb[0].mxu0
    %v97 = vadd.f32 0.0, %v96
    %v98 = vpop.f32.mrb[0].mxu0
    %99 = vdwg.mxu0
    %v100 = vpack.c.bf16 %v97, %v94
    %v101 = vld [vmem:[%s3] sm:$0xff]
    %v102 = vld [vmem:[%s2] sm:$0xff]
    %v104 = vunpack.c.l.b16 %v102
    %v105 = vunpack.c.h.b16 %v102
    %v106 = vpack.c.b16 %v104, %v104
    %v107 = vpack.c.b16 %v105, %v105
    %vm108 = vcmask 64512
    %v110 = vsel %vm108, %v100, 0
    %vm112 = vcmask 1043456
    %v114 = vsel %vm112, %v106, 0
    %v117 = vsel %vm112, %v107, 0
    %119 = vmatprep.subr.bf16.mxu0 %v117
    %120 = vmatpush1.bf16.msra.mxu0 %v114
    %121 = vmatprep.subr.bf16.mxu0 0
    %122 = vmatpush1.bf16.msra.mxu0 0
    %123 = vmatprep.subr.bf16.mxu0 0
    %124 = vmatpush1.bf16.msra.mxu0 0
    %125 = vmatprep.subr.bf16.mxu0 0
    %126 = vmatpush1.bf16.msra.mxu0 0
    %127 = vmatprep.subr.bf16.mxu0 0
    %128 = vmatpush1.bf16.msra.mxu0 0
    %129 = vmatprep.subr.bf16.mxu0 0
    %130 = vmatpush1.bf16.msra.mxu0 0
    %131 = vmatprep.subr.bf16.mxu0 0
    %132 = vmatpush1.bf16.msra.mxu0 0
    %133 = vmatprep.subr.bf16.mxu0 0
    %134 = vmatpush1.bf16.msra.mxu0 0
    %135 = vmatprep.subr.bf16.mxu0 0
    %136 = vmatpush1.bf16.msra.mxu0 0
    %137 = vmatprep.subr.bf16.mxu0 0
    %138 = vmatpush1.bf16.msra.mxu0 0
    %139 = vmatprep.subr.bf16.mxu0 0
    %140 = vmatpush1.bf16.msra.mxu0 0
    %141 = vmatprep.subr.bf16.mxu0 0
    %142 = vmatpush1.bf16.msra.mxu0 0
    %143 = vmatprep.subr.bf16.mxu0 0
    %144 = vmatpush1.bf16.msra.mxu0 0
    %145 = vmatprep.subr.bf16.mxu0 0
    %146 = vmatpush1.bf16.msra.mxu0 0
    %147 = vmatprep.subr.bf16.mxu0 0
    %148 = vmatpush1.bf16.msra.mxu0 0
    %149 = vmatprep.subr.bf16.mxu0 0
    %150 = vmatpush1.bf16.msra.mxu0 0
    %151 = vmatprep.mubr.bf16.mxu0 0
    %152 = vmatmul.mubr.bf16.gmra.mrb[0].mxu0 %v110
    %v153 = vpop.f32.mrb[0].mxu0
    %v154 = vadd.f32 0.0, %v153
    %v155 = vpop.f32.mrb[0].mxu0
    %v156 = vadd.f32 0.0, %v155
    %v157 = vpop.f32.mrb[0].mxu0
    %v158 = vadd.f32 0.0, %v157
    %v159 = vpop.f32.mrb[0].mxu0
    %v160 = vadd.f32 0.0, %v159
    %161 = vdwg.mxu0
    %v163 = vunpack.c.l.b16 %v101
    %v164 = vunpack.c.h.b16 %v101
    %v165 = vpack.c.b16 %v163, %v163
    %v166 = vpack.c.b16 %v164, %v164
    %v168 = vsel %vm108, %v53, 0
    %v171 = vsel %vm112, %v165, 0
    %v174 = vsel %vm112, %v166, 0
    %176 = vmatprep.subr.bf16.mxu0 %v174
    %177 = vmatpush1.bf16.msra.mxu0 %v171
    %178 = vmatprep.subr.bf16.mxu0 0
    %179 = vmatpush1.bf16.msra.mxu0 0
    %180 = vmatprep.subr.bf16.mxu0 0
    %181 = vmatpush1.bf16.msra.mxu0 0
    %182 = vmatprep.subr.bf16.mxu0 0
    %183 = vmatpush1.bf16.msra.mxu0 0
    %184 = vmatprep.subr.bf16.mxu0 0
    %185 = vmatpush1.bf16.msra.mxu0 0
    %186 = vmatprep.subr.bf16.mxu0 0
    %187 = vmatpush1.bf16.msra.mxu0 0
    %188 = vmatprep.subr.bf16.mxu0 0
    %189 = vmatpush1.bf16.msra.mxu0 0
    %190 = vmatprep.subr.bf16.mxu0 0
    %191 = vmatpush1.bf16.msra.mxu0 0
    %192 = vmatprep.subr.bf16.mxu0 0
    %193 = vmatpush1.bf16.msra.mxu0 0
    %194 = vmatprep.subr.bf16.mxu0 0
    %195 = vmatpush1.bf16.msra.mxu0 0
    %196 = vmatprep.subr.bf16.mxu0 0
    %197 = vmatpush1.bf16.msra.mxu0 0
    %198 = vmatprep.subr.bf16.mxu0 0
    %199 = vmatpush1.bf16.msra.mxu0 0
    %200 = vmatprep.subr.bf16.mxu0 0
    %201 = vmatpush1.bf16.msra.mxu0 0
    %202 = vmatprep.subr.bf16.mxu0 0
    %203 = vmatpush1.bf16.msra.mxu0 0
    %204 = vmatprep.subr.bf16.mxu0 0
    %205 = vmatpush1.bf16.msra.mxu0 0
    %206 = vmatprep.subr.bf16.mxu0 0
    %207 = vmatpush1.bf16.msra.mxu0 0
    %208 = vmatprep.mubr.bf16.mxu0 0
    %209 = vmatmul.mubr.bf16.gmra.mrb[0].mxu0 %v168
    %v210 = vpop.f32.mrb[0].mxu0
    %v211 = vadd.f32 %v154, %v210
    %v212 = vpop.f32.mrb[0].mxu0
    %v213 = vadd.f32 %v156, %v212
    %v214 = vpop.f32.mrb[0].mxu0
    %v215 = vadd.f32 %v158, %v214
    %v216 = vpop.f32.mrb[0].mxu0
    %v217 = vadd.f32 %v160, %v216
    %218 = vdwg.mxu0
    %v219 = vld [vmem:[%s4] sm:$0x3]
    %v221 = vlaneseq
    %v222 = vshrl.u32 %v221, 7
    %v223 = vsub.s32 0, %v222
    %v224 = vrot.slane %v219, %v223
    %v225 = vlaneseq
    %v226 = vshrl.u32 %v225, 7
    %v227 = vsub.s32 1, %v226
    %v228 = vrot.slane %v219, %v227
    %v231 = vadd.f32 %v211, %v224
    %v232 = vadd.f32 %v213, %v228
    %v233 = vadd.f32 %v215, %v224
    %v234 = vadd.f32 %v217, %v228
    %v235 = vtanh.pop %v231
    %v236 = vtanh.pop %v232
    %v237 = vtanh.pop %v233
    %v238 = vtanh.pop %v234
    %v239 = vpack.c.bf16 %v237, %v235
    %v240 = vpack.c.bf16 %v238, %v236
    %v241 = vld [vmem:[%s5] sm:$0xff]
    %v242 = vld [vmem:[%s5 + $0x8] sm:$0xff]
    %v243 = vld [vmem:[%s5 + $0x10] sm:$0xff]
    %v244 = vld [vmem:[%s5 + $0x18] sm:$0xff]
    %v245 = vld [vmem:[%s5 + $0x20] sm:$0xff]
    %v246 = vld [vmem:[%s5 + $0x28] sm:$0xff]
    %v247 = vld [vmem:[%s5 + $0x30] sm:$0xff]
    %v248 = vld [vmem:[%s5 + $0x38] sm:$0xff]
    %v249 = vld [vmem:[%s5 + $0x40] sm:$0xff]
    %v250 = vld [vmem:[%s5 + $0x48] sm:$0xff]
    %v251 = vld [vmem:[%s5 + $0x50] sm:$0xff]
    %v252 = vld [vmem:[%s5 + $0x58] sm:$0xff]
    %v253 = vld [vmem:[%s5 + $0x60] sm:$0xff]
    %v254 = vld [vmem:[%s5 + $0x68] sm:$0xff]
    %v255 = vld [vmem:[%s5 + $0x70] sm:$0xff]
    %v256 = vld [vmem:[%s5 + $0x78] sm:$0xff]
    %v257 = vld [vmem:[%s5 + $0x80] sm:$0xff]
    %v258 = vld [vmem:[%s5 + $0x88] sm:$0xff]
    %v259 = vld [vmem:[%s5 + $0x90] sm:$0xff]
    %v260 = vld [vmem:[%s5 + $0x98] sm:$0xff]
    %v261 = vld [vmem:[%s5 + $0xa0] sm:$0xff]
    %v262 = vld [vmem:[%s5 + $0xa8] sm:$0xff]
    %v263 = vld [vmem:[%s5 + $0xb0] sm:$0xff]
    %v264 = vld [vmem:[%s5 + $0xb8] sm:$0xff]
    %v265 = vld [vmem:[%s5 + $0xc0] sm:$0xff]
    %v266 = vld [vmem:[%s5 + $0xc8] sm:$0xff]
    %v267 = vld [vmem:[%s5 + $0xd0] sm:$0xff]
    %v268 = vld [vmem:[%s5 + $0xd8] sm:$0xff]
    %v269 = vld [vmem:[%s5 + $0xe0] sm:$0xff]
    %v270 = vld [vmem:[%s5 + $0xe8] sm:$0xff]
    %v271 = vld [vmem:[%s5 + $0xf0] sm:$0xff]
    %v272 = vld [vmem:[%s5 + $0xf8] sm:$0xff]
    %v305 = vunpack.c.l.b16 %v241
    %v306 = vunpack.c.h.b16 %v241
    %v307 = vunpack.c.l.b16 %v242
    %v308 = vunpack.c.h.b16 %v242
    %v309 = vunpack.c.l.b16 %v243
    %v310 = vunpack.c.h.b16 %v243
    %v311 = vunpack.c.l.b16 %v244
    %v312 = vunpack.c.h.b16 %v244
    %v313 = vunpack.c.l.b16 %v245
    %v314 = vunpack.c.h.b16 %v245
    %v315 = vunpack.c.l.b16 %v246
    %v316 = vunpack.c.h.b16 %v246
    %v317 = vunpack.c.l.b16 %v247
    %v318 = vunpack.c.h.b16 %v247
    %v319 = vunpack.c.l.b16 %v248
    %v320 = vunpack.c.h.b16 %v248
    %v321 = vunpack.c.l.b16 %v249
    %v322 = vunpack.c.h.b16 %v249
    %v323 = vunpack.c.l.b16 %v250
    %v324 = vunpack.c.h.b16 %v250
    %v325 = vunpack.c.l.b16 %v251
    %v326 = vunpack.c.h.b16 %v251
    %v327 = vunpack.c.l.b16 %v252
    %v328 = vunpack.c.h.b16 %v252
    %v329 = vunpack.c.l.b16 %v253
    %v330 = vunpack.c.h.b16 %v253
    %v331 = vunpack.c.l.b16 %v254
    %v332 = vunpack.c.h.b16 %v254
    %v333 = vunpack.c.l.b16 %v255
    %v334 = vunpack.c.h.b16 %v255
    %v335 = vunpack.c.l.b16 %v256
    %v336 = vunpack.c.h.b16 %v256
    %v337 = vunpack.c.l.b16 %v257
    %v338 = vunpack.c.h.b16 %v257
    %v339 = vunpack.c.l.b16 %v258
    %v340 = vunpack.c.h.b16 %v258
    %v341 = vunpack.c.l.b16 %v259
    %v342 = vunpack.c.h.b16 %v259
    %v343 = vunpack.c.l.b16 %v260
    %v344 = vunpack.c.h.b16 %v260
    %v345 = vunpack.c.l.b16 %v261
    %v346 = vunpack.c.h.b16 %v261
    %v347 = vunpack.c.l.b16 %v262
    %v348 = vunpack.c.h.b16 %v262
    %v349 = vunpack.c.l.b16 %v263
    %v350 = vunpack.c.h.b16 %v263
    %v351 = vunpack.c.l.b16 %v264
    %v352 = vunpack.c.h.b16 %v264
    %v353 = vunpack.c.l.b16 %v265
    %v354 = vunpack.c.h.b16 %v265
    %v355 = vunpack.c.l.b16 %v266
    %v356 = vunpack.c.h.b16 %v266
    %v357 = vunpack.c.l.b16 %v267
    %v358 = vunpack.c.h.b16 %v267
    %v359 = vunpack.c.l.b16 %v268
    %v360 = vunpack.c.h.b16 %v268
    %v361 = vunpack.c.l.b16 %v269
    %v362 = vunpack.c.h.b16 %v269
    %v363 = vunpack.c.l.b16 %v270
    %v364 = vunpack.c.h.b16 %v270
    %v365 = vunpack.c.l.b16 %v271
    %v366 = vunpack.c.h.b16 %v271
    %v367 = vunpack.c.l.b16 %v272
    %v368 = vunpack.c.h.b16 %v272
    %v369 = vpack.c.b16 %v307, %v305
    %v370 = vpack.c.b16 %v308, %v306
    %v371 = vpack.c.b16 %v311, %v309
    %v372 = vpack.c.b16 %v312, %v310
    %v373 = vpack.c.b16 %v315, %v313
    %v374 = vpack.c.b16 %v316, %v314
    %v375 = vpack.c.b16 %v319, %v317
    %v376 = vpack.c.b16 %v320, %v318
    %v377 = vpack.c.b16 %v323, %v321
    %v378 = vpack.c.b16 %v324, %v322
    %v379 = vpack.c.b16 %v327, %v325
    %v380 = vpack.c.b16 %v328, %v326
    %v381 = vpack.c.b16 %v331, %v329
    %v382 = vpack.c.b16 %v332, %v330
    %v383 = vpack.c.b16 %v335, %v333
    %v384 = vpack.c.b16 %v336, %v334
    %v385 = vpack.c.b16 %v339, %v337
    %v386 = vpack.c.b16 %v340, %v338
    %v387 = vpack.c.b16 %v343, %v341
    %v388 = vpack.c.b16 %v344, %v342
    %v389 = vpack.c.b16 %v347, %v345
    %v390 = vpack.c.b16 %v348, %v346
    %v391 = vpack.c.b16 %v351, %v349
    %v392 = vpack.c.b16 %v352, %v350
    %v393 = vpack.c.b16 %v355, %v353
    %v394 = vpack.c.b16 %v356, %v354
    %v395 = vpack.c.b16 %v359, %v357
    %v396 = vpack.c.b16 %v360, %v358
    %v397 = vpack.c.b16 %v363, %v361
    %v398 = vpack.c.b16 %v364, %v362
    %v399 = vpack.c.b16 %v367, %v365
    %v400 = vpack.c.b16 %v368, %v366
    %433 = vmatprep.subr.bf16.mxu0 %v370
    %434 = vmatpush1.bf16.msra.mxu0 %v369
    %435 = vmatprep.subr.bf16.mxu0 %v372
    %436 = vmatpush1.bf16.msra.mxu0 %v371
    %437 = vmatprep.subr.bf16.mxu0 %v374
    %438 = vmatpush1.bf16.msra.mxu0 %v373
    %439 = vmatprep.subr.bf16.mxu0 %v376
    %440 = vmatpush1.bf16.msra.mxu0 %v375
    %441 = vmatprep.subr.bf16.mxu0 %v378
    %442 = vmatpush1.bf16.msra.mxu0 %v377
    %443 = vmatprep.subr.bf16.mxu0 %v380
    %444 = vmatpush1.bf16.msra.mxu0 %v379
    %445 = vmatprep.subr.bf16.mxu0 %v382
    %446 = vmatpush1.bf16.msra.mxu0 %v381
    %447 = vmatprep.subr.bf16.mxu0 %v384
    %448 = vmatpush1.bf16.msra.mxu0 %v383
    %449 = vmatprep.subr.bf16.mxu0 %v386
    %450 = vmatpush1.bf16.msra.mxu0 %v385
    %451 = vmatprep.subr.bf16.mxu0 %v388
    %452 = vmatpush1.bf16.msra.mxu0 %v387
    %453 = vmatprep.subr.bf16.mxu0 %v390
    %454 = vmatpush1.bf16.msra.mxu0 %v389
    %455 = vmatprep.subr.bf16.mxu0 %v392
    %456 = vmatpush1.bf16.msra.mxu0 %v391
    %457 = vmatprep.subr.bf16.mxu0 %v394
    %458 = vmatpush1.bf16.msra.mxu0 %v393
    %459 = vmatprep.subr.bf16.mxu0 %v396
    %460 = vmatpush1.bf16.msra.mxu0 %v395
    %461 = vmatprep.subr.bf16.mxu0 %v398
    %462 = vmatpush1.bf16.msra.mxu0 %v397
    %463 = vmatprep.subr.bf16.mxu0 %v400
    %464 = vmatpush1.bf16.msra.mxu0 %v399
    %465 = vmatprep.mubr.bf16.mxu0 %v240
    %466 = vmatmul.mubr.bf16.gmra.mrb[0].mxu0 %v239
    %v467 = vpop.f32.mrb[0].mxu0
    %v468 = vadd.f32 0.0, %v467
    %v469 = vpop.f32.mrb[0].mxu0
    %v470 = vadd.f32 0.0, %v469
    %v471 = vpop.f32.mrb[0].mxu0
    %v472 = vadd.f32 0.0, %v471
    %v473 = vpop.f32.mrb[0].mxu0
    %v474 = vadd.f32 0.0, %v473
    %475 = vdwg.mxu0
    %v476 = vpack.c.bf16 %v472, %v468
    %v477 = vpack.c.bf16 %v474, %v470
    %v478 = vld [vmem:[%s6] sm:$0xff]
    %v479 = vld [vmem:[%s6 + $0x8] sm:$0xff]
    %v480 = vld [vmem:[%s6 + $0x10] sm:$0xff]
    %v481 = vld [vmem:[%s6 + $0x18] sm:$0xff]
    %v482 = vld [vmem:[%s6 + $0x20] sm:$0xff]
    %v483 = vld [vmem:[%s6 + $0x28] sm:$0xff]
    %v484 = vld [vmem:[%s6 + $0x30] sm:$0xff]
    %v485 = vld [vmem:[%s6 + $0x38] sm:$0xff]
    %v486 = vld [vmem:[%s6 + $0x40] sm:$0xff]
    %v487 = vld [vmem:[%s6 + $0x48] sm:$0xff]
    %v488 = vld [vmem:[%s6 + $0x50] sm:$0xff]
    %v489 = vld [vmem:[%s6 + $0x58] sm:$0xff]
    %v490 = vld [vmem:[%s6 + $0x60] sm:$0xff]
    %v491 = vld [vmem:[%s6 + $0x68] sm:$0xff]
    %v492 = vld [vmem:[%s6 + $0x70] sm:$0xff]
    %v493 = vld [vmem:[%s6 + $0x78] sm:$0xff]
    %v494 = vld [vmem:[%s6 + $0x80] sm:$0xff]
    %v495 = vld [vmem:[%s6 + $0x88] sm:$0xff]
    %v496 = vld [vmem:[%s6 + $0x90] sm:$0xff]
    %v497 = vld [vmem:[%s6 + $0x98] sm:$0xff]
    %v498 = vld [vmem:[%s6 + $0xa0] sm:$0xff]
    %v499 = vld [vmem:[%s6 + $0xa8] sm:$0xff]
    %v500 = vld [vmem:[%s6 + $0xb0] sm:$0xff]
    %v501 = vld [vmem:[%s6 + $0xb8] sm:$0xff]
    %v502 = vld [vmem:[%s6 + $0xc0] sm:$0xff]
    %v503 = vld [vmem:[%s6 + $0xc8] sm:$0xff]
    %v504 = vld [vmem:[%s6 + $0xd0] sm:$0xff]
    %v505 = vld [vmem:[%s6 + $0xd8] sm:$0xff]
    %v506 = vld [vmem:[%s6 + $0xe0] sm:$0xff]
    %v507 = vld [vmem:[%s6 + $0xe8] sm:$0xff]
    %v508 = vld [vmem:[%s6 + $0xf0] sm:$0xff]
    %v509 = vld [vmem:[%s6 + $0xf8] sm:$0xff]
    %510 = vmatprep.subr.bf16.mxu0 %v477
    %511 = vmatpush1.bf16.msra.mxu0 %v476
    %512 = vmatprep.subr.bf16.mxu0 0
    %513 = vmatpush1.bf16.msra.mxu0 0
    %514 = vmatprep.subr.bf16.mxu0 0
    %515 = vmatpush1.bf16.msra.mxu0 0
    %516 = vmatprep.subr.bf16.mxu0 0
    %517 = vmatpush1.bf16.msra.mxu0 0
    %518 = vmatprep.subr.bf16.mxu0 0
    %519 = vmatpush1.bf16.msra.mxu0 0
    %520 = vmatprep.subr.bf16.mxu0 0
    %521 = vmatpush1.bf16.msra.mxu0 0
    %522 = vmatprep.subr.bf16.mxu0 0
    %523 = vmatpush1.bf16.msra.mxu0 0
    %524 = vmatprep.subr.bf16.mxu0 0
    %525 = vmatpush1.bf16.msra.mxu0 0
    %526 = vmatprep.subr.bf16.mxu0 0
    %527 = vmatpush1.bf16.msra.mxu0 0
    %528 = vmatprep.subr.bf16.mxu0 0
    %529 = vmatpush1.bf16.msra.mxu0 0
    %530 = vmatprep.subr.bf16.mxu0 0
    %531 = vmatpush1.bf16.msra.mxu0 0
    %532 = vmatprep.subr.bf16.mxu0 0
    %533 = vmatpush1.bf16.msra.mxu0 0
    %534 = vmatprep.subr.bf16.mxu0 0
    %535 = vmatpush1.bf16.msra.mxu0 0
    %536 = vmatprep.subr.bf16.mxu0 0
    %537 = vmatpush1.bf16.msra.mxu0 0
    %538 = vmatprep.subr.bf16.mxu0 0
    %539 = vmatpush1.bf16.msra.mxu0 0
    %540 = vmatprep.subr.bf16.mxu0 0
    %541 = vmatpush1.bf16.msra.mxu0 0
    %542 = vmatprep.mubr.bf16.mxu0 0
    %543 = vmatmul.mubr.bf16.gmra.mrb[0].mxu0 %v57
    %v544 = vpop.f32.mrb[0].mxu0
    %v545 = vadd.f32 0.0, %v544
    %v546 = vpop.f32.mrb[0].mxu0
    %v547 = vadd.f32 0.0, %v546
    %v548 = vpop.f32.mrb[0].mxu0
    %v549 = vadd.f32 0.0, %v548
    %v550 = vpop.f32.mrb[0].mxu0
    %v551 = vadd.f32 0.0, %v550
    %552 = vdwg.mxu0
    %v585 = vunpack.c.l.b16 %v478
    %v586 = vunpack.c.h.b16 %v478
    %v587 = vunpack.c.l.b16 %v479
    %v588 = vunpack.c.h.b16 %v479
    %v589 = vunpack.c.l.b16 %v480
    %v590 = vunpack.c.h.b16 %v480
    %v591 = vunpack.c.l.b16 %v481
    %v592 = vunpack.c.h.b16 %v481
    %v593 = vunpack.c.l.b16 %v482
    %v594 = vunpack.c.h.b16 %v482
    %v595 = vunpack.c.l.b16 %v483
    %v596 = vunpack.c.h.b16 %v483
    %v597 = vunpack.c.l.b16 %v484
    %v598 = vunpack.c.h.b16 %v484
    %v599 = vunpack.c.l.b16 %v485
    %v600 = vunpack.c.h.b16 %v485
    %v601 = vunpack.c.l.b16 %v486
    %v602 = vunpack.c.h.b16 %v486
    %v603 = vunpack.c.l.b16 %v487
    %v604 = vunpack.c.h.b16 %v487
    %v605 = vunpack.c.l.b16 %v488
    %v606 = vunpack.c.h.b16 %v488
    %v607 = vunpack.c.l.b16 %v489
    %v608 = vunpack.c.h.b16 %v489
    %v609 = vunpack.c.l.b16 %v490
    %v610 = vunpack.c.h.b16 %v490
    %v611 = vunpack.c.l.b16 %v491
    %v612 = vunpack.c.h.b16 %v491
    %v613 = vunpack.c.l.b16 %v492
    %v614 = vunpack.c.h.b16 %v492
    %v615 = vunpack.c.l.b16 %v493
    %v616 = vunpack.c.h.b16 %v493
    %v617 = vunpack.c.l.b16 %v494
    %v618 = vunpack.c.h.b16 %v494
    %v619 = vunpack.c.l.b16 %v495
    %v620 = vunpack.c.h.b16 %v495
    %v621 = vunpack.c.l.b16 %v496
    %v622 = vunpack.c.h.b16 %v496
    %v623 = vunpack.c.l.b16 %v497
    %v624 = vunpack.c.h.b16 %v497
    %v625 = vunpack.c.l.b16 %v498
    %v626 = vunpack.c.h.b16 %v498
    %v627 = vunpack.c.l.b16 %v499
    %v628 = vunpack.c.h.b16 %v499
    %v629 = vunpack.c.l.b16 %v500
    %v630 = vunpack.c.h.b16 %v500
    %v631 = vunpack.c.l.b16 %v501
    %v632 = vunpack.c.h.b16 %v501
    %v633 = vunpack.c.l.b16 %v502
    %v634 = vunpack.c.h.b16 %v502
    %v635 = vunpack.c.l.b16 %v503
    %v636 = vunpack.c.h.b16 %v503
    %v637 = vunpack.c.l.b16 %v504
    %v638 = vunpack.c.h.b16 %v504
    %v639 = vunpack.c.l.b16 %v505
    %v640 = vunpack.c.h.b16 %v505
    %v641 = vunpack.c.l.b16 %v506
    %v642 = vunpack.c.h.b16 %v506
    %v643 = vunpack.c.l.b16 %v507
    %v644 = vunpack.c.h.b16 %v507
    %v645 = vunpack.c.l.b16 %v508
    %v646 = vunpack.c.h.b16 %v508
    %v647 = vunpack.c.l.b16 %v509
    %v648 = vunpack.c.h.b16 %v509
    %v649 = vpack.c.b16 %v587, %v585
    %v650 = vpack.c.b16 %v588, %v586
    %v651 = vpack.c.b16 %v591, %v589
    %v652 = vpack.c.b16 %v592, %v590
    %v653 = vpack.c.b16 %v595, %v593
    %v654 = vpack.c.b16 %v596, %v594
    %v655 = vpack.c.b16 %v599, %v597
    %v656 = vpack.c.b16 %v600, %v598
    %v657 = vpack.c.b16 %v603, %v601
    %v658 = vpack.c.b16 %v604, %v602
    %v659 = vpack.c.b16 %v607, %v605
    %v660 = vpack.c.b16 %v608, %v606
    %v661 = vpack.c.b16 %v611, %v609
    %v662 = vpack.c.b16 %v612, %v610
    %v663 = vpack.c.b16 %v615, %v613
    %v664 = vpack.c.b16 %v616, %v614
    %v665 = vpack.c.b16 %v619, %v617
    %v666 = vpack.c.b16 %v620, %v618
    %v667 = vpack.c.b16 %v623, %v621
    %v668 = vpack.c.b16 %v624, %v622
    %v669 = vpack.c.b16 %v627, %v625
    %v670 = vpack.c.b16 %v628, %v626
    %v671 = vpack.c.b16 %v631, %v629
    %v672 = vpack.c.b16 %v632, %v630
    %v673 = vpack.c.b16 %v635, %v633
    %v674 = vpack.c.b16 %v636, %v634
    %v675 = vpack.c.b16 %v639, %v637
    %v676 = vpack.c.b16 %v640, %v638
    %v677 = vpack.c.b16 %v643, %v641
    %v678 = vpack.c.b16 %v644, %v642
    %v679 = vpack.c.b16 %v647, %v645
    %v680 = vpack.c.b16 %v648, %v646
    %713 = vmatprep.subr.bf16.mxu0 %v650
    %714 = vmatpush1.bf16.msra.mxu0 %v649
    %715 = vmatprep.subr.bf16.mxu0 %v652
    %716 = vmatpush1.bf16.msra.mxu0 %v651
    %717 = vmatprep.subr.bf16.mxu0 %v654
    %718 = vmatpush1.bf16.msra.mxu0 %v653
    %719 = vmatprep.subr.bf16.mxu0 %v656
    %720 = vmatpush1.bf16.msra.mxu0 %v655
    %721 = vmatprep.subr.bf16.mxu0 %v658
    %722 = vmatpush1.bf16.msra.mxu0 %v657
    %723 = vmatprep.subr.bf16.mxu0 %v660
    %724 = vmatpush1.bf16.msra.mxu0 %v659
    %725 = vmatprep.subr.bf16.mxu0 %v662
    %726 = vmatpush1.bf16.msra.mxu0 %v661
    %727 = vmatprep.subr.bf16.mxu0 %v664
    %728 = vmatpush1.bf16.msra.mxu0 %v663
    %729 = vmatprep.subr.bf16.mxu0 %v666
    %730 = vmatpush1.bf16.msra.mxu0 %v665
    %731 = vmatprep.subr.bf16.mxu0 %v668
    %732 = vmatpush1.bf16.msra.mxu0 %v667
    %733 = vmatprep.subr.bf16.mxu0 %v670
    %734 = vmatpush1.bf16.msra.mxu0 %v669
    %735 = vmatprep.subr.bf16.mxu0 %v672
    %736 = vmatpush1.bf16.msra.mxu0 %v671
    %737 = vmatprep.subr.bf16.mxu0 %v674
    %738 = vmatpush1.bf16.msra.mxu0 %v673
    %739 = vmatprep.subr.bf16.mxu0 %v676
    %740 = vmatpush1.bf16.msra.mxu0 %v675
    %741 = vmatprep.subr.bf16.mxu0 %v678
    %742 = vmatpush1.bf16.msra.mxu0 %v677
    %743 = vmatprep.subr.bf16.mxu0 %v680
    %744 = vmatpush1.bf16.msra.mxu0 %v679
    %745 = vmatprep.mubr.bf16.mxu0 %v240
    %746 = vmatmul.mubr.bf16.gmra.mrb[0].mxu0 %v239
    %v747 = vpop.f32.mrb[0].mxu0
    %v748 = vadd.f32 %v545, %v747
    %v749 = vpop.f32.mrb[0].mxu0
    %v750 = vadd.f32 %v547, %v749
    %v751 = vpop.f32.mrb[0].mxu0
    %v752 = vadd.f32 %v549, %v751
    %v753 = vpop.f32.mrb[0].mxu0
    %v754 = vadd.f32 %v551, %v753
    %755 = vdwg.mxu0
    %v756 = vld [vmem:[%s7] sm:$0x3]
    %v758 = vlaneseq
    %v759 = vshrl.u32 %v758, 7
    %v760 = vsub.s32 0, %v759
    %v761 = vrot.slane %v756, %v760
    %v762 = vlaneseq
    %v763 = vshrl.u32 %v762, 7
    %v764 = vsub.s32 1, %v763
    %v765 = vrot.slane %v756, %v764
    %v768 = vadd.f32 %v748, %v761
    %v769 = vadd.f32 %v750, %v765
    %v770 = vadd.f32 %v752, %v761
    %v771 = vadd.f32 %v754, %v765
    %v772 = vmax.f32 %v768, 0.0
    %v773 = vmax.f32 %v769, 0.0
    %v774 = vmax.f32 %v770, 0.0
    %v775 = vmax.f32 %v771, 0.0
    %v776 = vpack.c.bf16 %v774, %v772
    %v777 = vpack.c.bf16 %v775, %v773
    %v778 = vld [vmem:[%s8] sm:$0xf]
    %v779 = vld [vmem:[%s8 + $0x4] sm:$0xf]
    %v780 = vld [vmem:[%s8 + $0x8] sm:$0xf]
    %v781 = vld [vmem:[%s8 + $0xc] sm:$0xf]
    %v782 = vld [vmem:[%s8 + $0x10] sm:$0xf]
    %v783 = vld [vmem:[%s8 + $0x14] sm:$0xf]
    %v784 = vld [vmem:[%s8 + $0x18] sm:$0xf]
    %v785 = vld [vmem:[%s8 + $0x1c] sm:$0xf]
    %v786 = vld [vmem:[%s8 + $0x20] sm:$0xf]
    %v787 = vld [vmem:[%s8 + $0x24] sm:$0xf]
    %v788 = vld [vmem:[%s8 + $0x28] sm:$0xf]
    %v789 = vld [vmem:[%s8 + $0x2c] sm:$0xf]
    %v790 = vld [vmem:[%s8 + $0x30] sm:$0xf]
    %v791 = vld [vmem:[%s8 + $0x34] sm:$0xf]
    %v792 = vld [vmem:[%s8 + $0x38] sm:$0xf]
    %v793 = vld [vmem:[%s8 + $0x3c] sm:$0xf]
    %v794 = vld [vmem:[%s8 + $0x40] sm:$0xf]
    %v795 = vld [vmem:[%s8 + $0x44] sm:$0xf]
    %v796 = vld [vmem:[%s8 + $0x48] sm:$0xf]
    %v797 = vld [vmem:[%s8 + $0x4c] sm:$0xf]
    %v798 = vld [vmem:[%s8 + $0x50] sm:$0xf]
    %v799 = vld [vmem:[%s8 + $0x54] sm:$0xf]
    %v800 = vld [vmem:[%s8 + $0x58] sm:$0xf]
    %v801 = vld [vmem:[%s8 + $0x5c] sm:$0xf]
    %v826 = vunpack.c.l.b16 %v778
    %v827 = vunpack.c.l.b16 %v779
    %v828 = vunpack.c.l.b16 %v780
    %v829 = vunpack.c.l.b16 %v781
    %v830 = vunpack.c.l.b16 %v782
    %v831 = vunpack.c.l.b16 %v783
    %v832 = vunpack.c.l.b16 %v784
    %v833 = vunpack.c.l.b16 %v785
    %v834 = vunpack.c.l.b16 %v786
    %v835 = vunpack.c.l.b16 %v787
    %v836 = vunpack.c.l.b16 %v788
    %v837 = vunpack.c.l.b16 %v789
    %v838 = vunpack.c.l.b16 %v790
    %v839 = vunpack.c.l.b16 %v791
    %v840 = vunpack.c.l.b16 %v792
    %v841 = vunpack.c.l.b16 %v793
    %v842 = vunpack.c.l.b16 %v794
    %v843 = vunpack.c.l.b16 %v795
    %v844 = vunpack.c.l.b16 %v796
    %v845 = vunpack.c.l.b16 %v797
    %v846 = vunpack.c.l.b16 %v798
    %v847 = vunpack.c.l.b16 %v799
    %v848 = vunpack.c.l.b16 %v800
    %v849 = vunpack.c.l.b16 %v801
    %v850 = vpack.c.b16 %v827, %v826
    %v851 = vpack.c.b16 %v829, %v828
    %v852 = vpack.c.b16 %v831, %v830
    %v853 = vpack.c.b16 %v833, %v832
    %v854 = vpack.c.b16 %v835, %v834
    %v855 = vpack.c.b16 %v837, %v836
    %v856 = vpack.c.b16 %v839, %v838
    %v857 = vpack.c.b16 %v841, %v840
    %v858 = vpack.c.b16 %v843, %v842
    %v859 = vpack.c.b16 %v845, %v844
    %v860 = vpack.c.b16 %v847, %v846
    %v861 = vpack.c.b16 %v849, %v848
    %vm874 = vcmask 523264
    %v876 = vsel %vm874, %v777, 0
    %878 = vmatprep.subr.bf16.mxu0 0
    %879 = vmatpush1.bf16.msra.mxu0 %v850
    %880 = vmatprep.subr.bf16.mxu0 0
    %881 = vmatpush1.bf16.msra.mxu0 %v851
    %882 = vmatprep.subr.bf16.mxu0 0
    %883 = vmatpush1.bf16.msra.mxu0 %v852
    %884 = vmatprep.subr.bf16.mxu0 0
    %885 = vmatpush1.bf16.msra.mxu0 %v853
    %886 = vmatprep.subr.bf16.mxu0 0
    %887 = vmatpush1.bf16.msra.mxu0 %v854
    %888 = vmatprep.subr.bf16.mxu0 0
    %889 = vmatpush1.bf16.msra.mxu0 %v855
    %890 = vmatprep.subr.bf16.mxu0 0
    %891 = vmatpush1.bf16.msra.mxu0 %v856
    %892 = vmatprep.subr.bf16.mxu0 0
    %893 = vmatpush1.bf16.msra.mxu0 %v857
    %894 = vmatprep.subr.bf16.mxu0 0
    %895 = vmatpush1.bf16.msra.mxu0 %v858
    %896 = vmatprep.subr.bf16.mxu0 0
    %897 = vmatpush1.bf16.msra.mxu0 %v859
    %898 = vmatprep.subr.bf16.mxu0 0
    %899 = vmatpush1.bf16.msra.mxu0 %v860
    %900 = vmatprep.subr.bf16.mxu0 0
    %901 = vmatpush1.bf16.msra.mxu0 %v861
    %902 = vmatprep.subr.bf16.mxu0 0
    %903 = vmatpush1.bf16.msra.mxu0 0
    %904 = vmatprep.subr.bf16.mxu0 0
    %905 = vmatpush1.bf16.msra.mxu0 0
    %906 = vmatprep.subr.bf16.mxu0 0
    %907 = vmatpush1.bf16.msra.mxu0 0
    %908 = vmatprep.subr.bf16.mxu0 0
    %909 = vmatpush1.bf16.msra.mxu0 0
    %910 = vmatprep.mubr.bf16.mxu0 %v876
    %911 = vmatmul.mubr.bf16.gmra.mrb[0].mxu0 %v776
    %v912 = vpop.f32.mrb[0].mxu0
    %v913 = vadd.f32 0.0, %v912
    %v914 = vpop.f32.mrb[0].mxu0
    %v915 = vpop.f32.mrb[0].mxu0
    %v916 = vadd.f32 0.0, %v915
    %v917 = vpop.f32.mrb[0].mxu0
    %918 = vdwg.mxu0
    %v919 = vpack.c.bf16 %v916, %v913
    %v920 = vld [vmem:[%s9] sm:$0xf]
    %v921 = vld [vmem:[%s9 + $0x4] sm:$0xf]
    %v922 = vld [vmem:[%s9 + $0x8] sm:$0xf]
    %v923 = vld [vmem:[%s9 + $0xc] sm:$0xf]
    %v924 = vld [vmem:[%s9 + $0x10] sm:$0xf]
    %v925 = vld [vmem:[%s9 + $0x14] sm:$0xf]
    %v926 = vld [vmem:[%s9 + $0x18] sm:$0xf]
    %v927 = vld [vmem:[%s9 + $0x1c] sm:$0xf]
    %v928 = vld [vmem:[%s9 + $0x20] sm:$0xf]
    %v929 = vld [vmem:[%s9 + $0x24] sm:$0xf]
    %v930 = vld [vmem:[%s9 + $0x28] sm:$0xf]
    %v931 = vld [vmem:[%s9 + $0x2c] sm:$0xf]
    %v932 = vld [vmem:[%s9 + $0x30] sm:$0xf]
    %v933 = vld [vmem:[%s9 + $0x34] sm:$0xf]
    %v934 = vld [vmem:[%s9 + $0x38] sm:$0xf]
    %v935 = vld [vmem:[%s9 + $0x3c] sm:$0xf]
    %v936 = vld [vmem:[%s9 + $0x40] sm:$0xf]
    %v937 = vld [vmem:[%s9 + $0x44] sm:$0xf]
    %v938 = vld [vmem:[%s9 + $0x48] sm:$0xf]
    %v939 = vld [vmem:[%s9 + $0x4c] sm:$0xf]
    %v940 = vld [vmem:[%s9 + $0x50] sm:$0xf]
    %v941 = vld [vmem:[%s9 + $0x54] sm:$0xf]
    %v942 = vld [vmem:[%s9 + $0x58] sm:$0xf]
    %v943 = vld [vmem:[%s9 + $0x5c] sm:$0xf]
    %944 = vmatprep.subr.bf16.mxu0 0
    %945 = vmatpush1.bf16.msra.mxu0 %v919
    %946 = vmatprep.subr.bf16.mxu0 0
    %947 = vmatpush1.bf16.msra.mxu0 0
    %948 = vmatprep.subr.bf16.mxu0 0
    %949 = vmatpush1.bf16.msra.mxu0 0
    %950 = vmatprep.subr.bf16.mxu0 0
    %951 = vmatpush1.bf16.msra.mxu0 0
    %952 = vmatprep.subr.bf16.mxu0 0
    %953 = vmatpush1.bf16.msra.mxu0 0
    %954 = vmatprep.subr.bf16.mxu0 0
    %955 = vmatpush1.bf16.msra.mxu0 0
    %956 = vmatprep.subr.bf16.mxu0 0
    %957 = vmatpush1.bf16.msra.mxu0 0
    %958 = vmatprep.subr.bf16.mxu0 0
    %959 = vmatpush1.bf16.msra.mxu0 0
    %960 = vmatprep.subr.bf16.mxu0 0
    %961 = vmatpush1.bf16.msra.mxu0 0
    %962 = vmatprep.subr.bf16.mxu0 0
    %963 = vmatpush1.bf16.msra.mxu0 0
    %964 = vmatprep.subr.bf16.mxu0 0
    %965 = vmatpush1.bf16.msra.mxu0 0
    %966 = vmatprep.subr.bf16.mxu0 0
    %967 = vmatpush1.bf16.msra.mxu0 0
    %968 = vmatprep.subr.bf16.mxu0 0
    %969 = vmatpush1.bf16.msra.mxu0 0
    %970 = vmatprep.subr.bf16.mxu0 0
    %971 = vmatpush1.bf16.msra.mxu0 0
    %972 = vmatprep.subr.bf16.mxu0 0
    %973 = vmatpush1.bf16.msra.mxu0 0
    %974 = vmatprep.subr.bf16.mxu0 0
    %975 = vmatpush1.bf16.msra.mxu0 0
    %976 = vmatprep.mubr.bf16.mxu0 0
    %977 = vmatmul.mubr.bf16.gmra.mrb[0].mxu0 %v57
    %v978 = vpop.f32.mrb[0].mxu0
    %v979 = vadd.f32 0.0, %v978
    %v980 = vpop.f32.mrb[0].mxu0
    %v981 = vpop.f32.mrb[0].mxu0
    %v982 = vadd.f32 0.0, %v981
    %v983 = vpop.f32.mrb[0].mxu0
    %984 = vdwg.mxu0
    %v1009 = vunpack.c.l.b16 %v920
    %v1010 = vunpack.c.l.b16 %v921
    %v1011 = vunpack.c.l.b16 %v922
    %v1012 = vunpack.c.l.b16 %v923
    %v1013 = vunpack.c.l.b16 %v924
    %v1014 = vunpack.c.l.b16 %v925
    %v1015 = vunpack.c.l.b16 %v926
    %v1016 = vunpack.c.l.b16 %v927
    %v1017 = vunpack.c.l.b16 %v928
    %v1018 = vunpack.c.l.b16 %v929
    %v1019 = vunpack.c.l.b16 %v930
    %v1020 = vunpack.c.l.b16 %v931
    %v1021 = vunpack.c.l.b16 %v932
    %v1022 = vunpack.c.l.b16 %v933
    %v1023 = vunpack.c.l.b16 %v934
    %v1024 = vunpack.c.l.b16 %v935
    %v1025 = vunpack.c.l.b16 %v936
    %v1026 = vunpack.c.l.b16 %v937
    %v1027 = vunpack.c.l.b16 %v938
    %v1028 = vunpack.c.l.b16 %v939
    %v1029 = vunpack.c.l.b16 %v940
    %v1030 = vunpack.c.l.b16 %v941
    %v1031 = vunpack.c.l.b16 %v942
    %v1032 = vunpack.c.l.b16 %v943
    %v1033 = vpack.c.b16 %v1010, %v1009
    %v1034 = vpack.c.b16 %v1012, %v1011
    %v1035 = vpack.c.b16 %v1014, %v1013
    %v1036 = vpack.c.b16 %v1016, %v1015
    %v1037 = vpack.c.b16 %v1018, %v1017
    %v1038 = vpack.c.b16 %v1020, %v1019
    %v1039 = vpack.c.b16 %v1022, %v1021
    %v1040 = vpack.c.b16 %v1024, %v1023
    %v1041 = vpack.c.b16 %v1026, %v1025
    %v1042 = vpack.c.b16 %v1028, %v1027
    %v1043 = vpack.c.b16 %v1030, %v1029
    %v1044 = vpack.c.b16 %v1032, %v1031
    %1057 = vmatprep.subr.bf16.mxu0 0
    %1058 = vmatpush1.bf16.msra.mxu0 %v1033
    %1059 = vmatprep.subr.bf16.mxu0 0
    %1060 = vmatpush1.bf16.msra.mxu0 %v1034
    %1061 = vmatprep.subr.bf16.mxu0 0
    %1062 = vmatpush1.bf16.msra.mxu0 %v1035
    %1063 = vmatprep.subr.bf16.mxu0 0
    %1064 = vmatpush1.bf16.msra.mxu0 %v1036
    %1065 = vmatprep.subr.bf16.mxu0 0
    %1066 = vmatpush1.bf16.msra.mxu0 %v1037
    %1067 = vmatprep.subr.bf16.mxu0 0
    %1068 = vmatpush1.bf16.msra.mxu0 %v1038
    %1069 = vmatprep.subr.bf16.mxu0 0
    %1070 = vmatpush1.bf16.msra.mxu0 %v1039
    %1071 = vmatprep.subr.bf16.mxu0 0
    %1072 = vmatpush1.bf16.msra.mxu0 %v1040
    %1073 = vmatprep.subr.bf16.mxu0 0
    %1074 = vmatpush1.bf16.msra.mxu0 %v1041
    %1075 = vmatprep.subr.bf16.mxu0 0
    %1076 = vmatpush1.bf16.msra.mxu0 %v1042
    %1077 = vmatprep.subr.bf16.mxu0 0
    %1078 = vmatpush1.bf16.msra.mxu0 %v1043
    %1079 = vmatprep.subr.bf16.mxu0 0
    %1080 = vmatpush1.bf16.msra.mxu0 %v1044
    %1081 = vmatprep.subr.bf16.mxu0 0
    %1082 = vmatpush1.bf16.msra.mxu0 0
    %1083 = vmatprep.subr.bf16.mxu0 0
    %1084 = vmatpush1.bf16.msra.mxu0 0
    %1085 = vmatprep.subr.bf16.mxu0 0
    %1086 = vmatpush1.bf16.msra.mxu0 0
    %1087 = vmatprep.subr.bf16.mxu0 0
    %1088 = vmatpush1.bf16.msra.mxu0 0
    %1089 = vmatprep.mubr.bf16.mxu0 %v876
    %1090 = vmatmul.mubr.bf16.gmra.mrb[0].mxu0 %v776
    %v1091 = vpop.f32.mrb[0].mxu0
    %v1092 = vadd.f32 %v979, %v1091
    %v1093 = vpop.f32.mrb[0].mxu0
    %v1094 = vpop.f32.mrb[0].mxu0
    %v1095 = vadd.f32 %v982, %v1094
    %v1096 = vpop.f32.mrb[0].mxu0
    %1097 = vdwg.mxu0
    %v1098 = vld [vmem:[%s10] sm:$0x1]
    %v1100 = vlaneseq
    %v1101 = vshrl.u32 %v1100, 7
    %v1102 = vsub.s32 0, %v1101
    %v1103 = vrot.slane %v1098, %v1102
    %v1105 = vadd.f32 %v1092, %v1103
    %v1106 = vadd.f32 %v1095, %v1103
    %v1107 = vmul.f32 %v1105, 0.5
    %v1108 = vmul.f32 %v1106, 0.5
    %v1109 = vtanh.pop %v1107
    %v1110 = vtanh.pop %v1108
    %v1111 = vadd.f32 %v1109, 1.0
    %v1112 = vadd.f32 %v1110, 1.0
    %v1113 = vmul.f32 %v1111, 0.5
    %v1114 = vmul.f32 %v1112, 0.5
    %1115 = vst [vmem:[#allocation2] sm:$0xff] %v1113
    %1116 = vst [vmem:[#allocation2 + $0x8] sm:$0xff] %v1114
    // Predicated region
    $region46: #{tpu_custom_call.1} parent=1 // pred_check
      _
    $region47: #{tpu_custom_call.1} parent=1 // pred_check_branch
      %1118 = sbr.rel (0) target = $region49
    $region48: #{tpu_custom_call.1} parent=1 // pred_region
      %s1120 = ssub.s32 256, 256
      %1121 = vsyncadd [#allocation3], %s1120
      %s1122 = sshll.u32 [#allocation2], 4
      %s1123 = int_to_ptr.vmem [resolvable:$true] %s1122
      %1128 = dma.vmem_to_hbm [thread:$0]  %s1123, 256, %s11, [#allocation3], 128, 128, 8
    $region49: #{tpu_custom_call.1} parent=1 // pred_fallthru
      _
    // Predicated region
    $region50: #{tpu_custom_call.1} parent=1 // pred_check
      _
    $region51: #{tpu_custom_call.1} parent=1 // pred_check_branch
      %1130 = sbr.rel (0) target = $region53
    $region52: #{tpu_custom_call.1} parent=1 // pred_region
      %1131 = dma.done [#allocation3], 256
    $region53: #{tpu_custom_call.1} parent=1 // pred_fallthru
      _
    %1132 = vsyncpa [#allocation3], 1

</llo_original>
